<compile_context>
chip_gen: v7x
topology: tpu7x:2x2x1
jax: 0.10.0
libtpu: 0.0.40
codegen_flags: <defaults>
</compile_context>

<pallas_src>
import math

import jax
import jax.numpy as jnp
from jax.experimental import pallas as pl
from jax.experimental.pallas import tpu as pltpu

_MIB = 1024 * 1024


def _add_kernel(x_ref, y_ref, o_ref):
    o_ref[...] = x_ref[...] + y_ref[...]


def _vmem_capacity_bytes() -> int:
    """Per-core VMEM capacity; conservative (v7x-like) fallback if unavailable."""
    try:
        return int(pltpu.get_tpu_info().vmem_capacity_bytes)
    except Exception:
        return 64 * _MIB


def _round_up(v: int, m: int) -> int:
    return -(-v // m) * m


def vector_add(x: jax.Array, y: jax.Array, *, lane_width: int = 1024) -> jax.Array:
    """Elementwise add of two same-shaped arrays via a Pallas TPU kernel."""
    assert x.shape == y.shape, "shapes must match (matches CUDA kernel semantics)"
    assert x.dtype == y.dtype

    orig_shape = x.shape
    dtype = x.dtype
    itemsize = jnp.dtype(dtype).itemsize
    n = x.size
    if n == 0:
        return (x + y).reshape(orig_shape)

    # Minimum sublane multiple for this dtype: 4B -> 8, 2B -> 16, 1B -> 32.
    sub_mult = max(8, 32 // itemsize)

    vmem_cap = _vmem_capacity_bytes()
    # ~8 MiB/input tiles on 128 MiB-VMEM parts (v5e/v6e), ~4 MiB on 64 MiB (v7x).
    target_tile_bytes = 8 * _MIB if vmem_cap >= 100 * _MIB else 4 * _MIB

    def _vmem_limit(tile_bytes: int) -> int:
        # 3 arrays x 2 pipeline buffers x tile, plus slack; capped at a fraction
        # of this generation's physical VMEM.
        return int(min(int(0.75 * vmem_cap),
                       max(16 * _MIB, 6 * tile_bytes + 4 * _MIB)))

    xf = jnp.ravel(x)
    yf = jnp.ravel(y)

    if n % 128 == 0:
        # ---------------- Fast path: lane-dense 2-D slab, no padding ----------------
        lw_units = max(1, lane_width // 128)
        W = 128 * math.gcd(n // 128, lw_units)   # multiple of 128, divides n exactly
        rows = n // W
        x2 = xf.reshape(rows, W)
        y2 = yf.reshape(rows, W)

        # Constant tile bytes: block rows = target_tile_bytes / row_bytes, rounded
        # to the dtype's sublane multiple, clamped to the (rounded-up) row count.
        br = max(sub_mult, (target_tile_bytes // (W * itemsize)) // sub_mult * sub_mult)
        br = min(br, _round_up(rows, sub_mult))
        # Keep >= 2 grid steps when possible so v7x can shard over both TensorCores.
        if pl.cdiv(rows, br) < 2 and rows > sub_mult:
            br = max(sub_mult, _round_up(pl.cdiv(rows, 2), sub_mult))

        grid = (pl.cdiv(rows, br),)   # partial last row-block is masked by Pallas
        tile_bytes = br * W * itemsize

        out2 = pl.pallas_call(
            _add_kernel,
            out_shape=jax.ShapeDtypeStruct((rows, W), dtype),
            grid=grid,
            in_specs=[
                pl.BlockSpec((br, W), lambda i: (i, 0)),
                pl.BlockSpec((br, W), lambda i: (i, 0)),
            ],
            out_specs=pl.BlockSpec((br, W), lambda i: (i, 0)),
            compiler_params=pltpu.CompilerParams(
                dimension_semantics=("parallel",),
                vmem_limit_bytes=_vmem_limit(tile_bytes),
            ),
        )(x2, y2)
        return out2.reshape(orig_shape)

    # ---------------- Ragged path: 1-D flat blocks, no padding, no post-slice ----------------
    # Block of E elements (E a multiple of 8*128 = 1024 so stores stay lane-dense);
    # Pallas masks the partial last block, so we never pad or re-slice.
    elems_per_tile = max(1024, target_tile_bytes // itemsize)
    E = max(1024, (elems_per_tile // 1024) * 1024)
    E = min(E, _round_up(n, 1024))
    if pl.cdiv(n, E) < 2 and n > 1024:
        E = max(1024, _round_up(pl.cdiv(n, 2), 1024))

    grid = (pl.cdiv(n, E),)
    tile_bytes = E * itemsize

    outf = pl.pallas_call(
        _add_kernel,
        out_shape=jax.ShapeDtypeStruct((n,), dtype),
        grid=grid,
        in_specs=[
            pl.BlockSpec((E,), lambda i: (i,)),
            pl.BlockSpec((E,), lambda i: (i,)),
        ],
        out_specs=pl.BlockSpec((E,), lambda i: (i,)),
        compiler_params=pltpu.CompilerParams(
            dimension_semantics=("parallel",),
            vmem_limit_bytes=_vmem_limit(tile_bytes),
        ),
    )(xf, yf)
    return outf.reshape(orig_shape)


if __name__ == "__main__":
    key = jax.random.PRNGKey(0)
    kx, ky = jax.random.split(key)

    # Small deterministic inputs (the CUDA kernel is a flat elementwise add).
    shape = (2, 4, 16, 16)
    x = jax.random.normal(kx, shape, dtype=jnp.float32)
    y = jax.random.normal(ky, shape, dtype=jnp.float32)

    out = vector_add(x, y)
    jax.block_until_ready(out)

    expected = x + y
    assert out.shape == expected.shape
    assert out.dtype == expected.dtype
    assert jnp.allclose(out, expected, atol=1e-6, rtol=1e-6)

    # Ragged size (non-multiple of 128) exercises the 1-D masked-block path.
    xr = jax.random.normal(kx, (1000,), dtype=jnp.float32)
    yr = jax.random.normal(ky, (1000,), dtype=jnp.float32)
    outr = vector_add(xr, yr)
    jax.block_until_ready(outr)
    assert jnp.allclose(outr, xr + yr, atol=1e-6, rtol=1e-6)

    # Larger multi-step case to exercise the pipelined grid.
    xb = jax.random.normal(kx, (64, 4096), dtype=jnp.float32)
    yb = jax.random.normal(ky, (64, 4096), dtype=jnp.float32)
    outb = vector_add(xb, yb)
    jax.block_until_ready(outb)
    assert jnp.allclose(outb, xb + yb, atol=1e-6, rtol=1e-6)

    print("KERNEL_OK")
</pallas_src>

<mosaic_0001>
module attributes {stable_mosaic.version = 11 : i64} {
  func.func @_add_kernel(%arg0: i32, %arg1: memref<8x1024xf32, #tpu.memory_space<vmem>>, %arg2: memref<8x1024xf32, #tpu.memory_space<vmem>>, %arg3: memref<8x1024xf32, #tpu.memory_space<vmem>>) attributes {dimension_semantics = [#tpu.dimension_semantics<parallel>], iteration_bounds = array<i64: 1>, scalar_prefetch = 0 : i64, scratch_operands = 0 : i64, tpu.core_type = #tpu.core_type<tc>, window_params = [{transform_indices = @transform_0, window_bounds = array<i64: 8, 1024>}, {transform_indices = @transform_1, window_bounds = array<i64: 8, 1024>}, {transform_indices = @transform_2, window_bounds = array<i64: 8, 1024>}]} {
    %c0 = arith.constant 0 : index
    %c0_0 = arith.constant 0 : index
    %0 = vector.load %arg1[%c0, %c0_0] : memref<8x1024xf32, #tpu.memory_space<vmem>>, vector<8x1024xf32>
    %c0_1 = arith.constant 0 : index
    %c0_2 = arith.constant 0 : index
    %1 = vector.load %arg2[%c0_1, %c0_2] : memref<8x1024xf32, #tpu.memory_space<vmem>>, vector<8x1024xf32>
    %2 = arith.addf %0, %1 : vector<8x1024xf32>
    %c0_3 = arith.constant 0 : index
    %c0_4 = arith.constant 0 : index
    %3 = vector.load %arg3[%c0_3, %c0_4] : memref<8x1024xf32, #tpu.memory_space<vmem>>, vector<8x1024xf32>
    tpu.vector_store %arg3[%c0_3, %c0_4], %2 {strides = array<i32>} : memref<8x1024xf32, #tpu.memory_space<vmem>>, vector<8x1024xf32>,
    return
  }
  func.func @transform_0(%arg0: i32) -> (i32, i32) {
    %c0_i32 = arith.constant 0 : i32
    %c0_i32_0 = arith.constant 0 : i32
    return %arg0, %c0_i32 : i32, i32
  }
  func.func @transform_1(%arg0: i32) -> (i32, i32) {
    %c0_i32 = arith.constant 0 : i32
    %c0_i32_0 = arith.constant 0 : i32
    return %arg0, %c0_i32 : i32, i32
  }
  func.func @transform_2(%arg0: i32) -> (i32, i32) {
    %c0_i32 = arith.constant 0 : i32
    %c0_i32_0 = arith.constant 0 : i32
    return %arg0, %c0_i32 : i32, i32
  }
}

</mosaic_0001>

<llo_original>
// kernel: tpu_custom_call.1
$region0: #{tpu_custom_call.1}
  #allocation0 [shape = 'u32[]', space=smem, size = 0x4, offset = 0x4, fixed_abs, tag = 'smem constant byte address 0x4 - core index']
  #allocation1 [shape = 'u32[144,128]{1,0:T(1,128)}', space=vmem, size = 0x12000, scoped, tag = 'internal scratch']
  %s0 = inlined_call_operand.hbm [shape: f32[2,1024], index: 0, kind: input, shape index: {}]
  %s1 = inlined_call_operand.hbm [shape: f32[2,1024], index: 1, kind: input, shape index: {}]
  %s2 = inlined_call_operand.hbm [shape: f32[2,1024], index: 2, kind: output, shape index: {}]
  %s3 = sld [smem:[#allocation0]]
  $region26: #{tpu_custom_call.1} parent=0
    _
  %s5 = ssub.s32 1, %s3
  %s6 = scalar_select 0, %s5, %s3
  $region1: #{tpu_custom_call.1} parent=0
    #allocation2 [shape = 'u8[32768]{0}', space=vmem, size = 0x8000, scoped, tag = 'input window, operand 0, single buffered']
    #allocation3 [shape = 's32[1]{0}', space=sflag, size = 0x4, scoped, tag = 'scoped memory for tpu_custom_call.1']
    #allocation4 [shape = 's32[1]{0}', space=sflag, size = 0x4, scoped, tag = 'scoped memory for tpu_custom_call.1']
    #allocation5 [shape = 'u8[32768]{0}', space=vmem, size = 0x8000, scoped, tag = 'input window, operand 1, single buffered']
    #allocation6 [shape = 's32[1]{0}', space=sflag, size = 0x4, scoped, tag = 'scoped memory for tpu_custom_call.1']
    #allocation7 [shape = 'u8[32768]{0}', space=vmem, size = 0x8000, scoped, tag = 'output window, operand 0, single buffered']
    %7 = vsyncpa [#allocation3], 0
    %8 = vsyncpa [#allocation6], 0
    %9 = vsyncpa [#allocation4], 0
    // Predicated region
    $region2: #{tpu_custom_call.1} parent=1 // pred_check
      _
    $region3: #{tpu_custom_call.1} parent=1 // pred_check_branch
      %11 = sbr.rel (0) target = $region5
    $region4: #{tpu_custom_call.1} parent=1 // pred_region
      %s13 = ssub.s32 1024, 256
      %14 = vsyncadd [#allocation3], %s13
      %s15 = sshll.u32 [#allocation2], 4
      %s16 = int_to_ptr.vmem [resolvable:$true] %s15
      %21 = dma.hbm_to_vmem [thread:$0]  %s0, 256, %s16, [#allocation3], 256, 256, 16
    $region5: #{tpu_custom_call.1} parent=1 // pred_fallthru
      _
    // Predicated region
    $region6: #{tpu_custom_call.1} parent=1 // pred_check
      _
    $region7: #{tpu_custom_call.1} parent=1 // pred_check_branch
      %23 = sbr.rel (0) target = $region9
    $region8: #{tpu_custom_call.1} parent=1 // pred_region
      %s25 = ssub.s32 1024, 256
      %26 = vsyncadd [#allocation6], %s25
      %s27 = sshll.u32 [#allocation5], 4
      %s28 = int_to_ptr.vmem [resolvable:$true] %s27
      %33 = dma.hbm_to_vmem [thread:$0]  %s1, 256, %s28, [#allocation6], 256, 256, 16
    $region9: #{tpu_custom_call.1} parent=1 // pred_fallthru
      _
    // Predicated region
    $region10: #{tpu_custom_call.1} parent=1 // pred_check
      _
    $region11: #{tpu_custom_call.1} parent=1 // pred_check_branch
      %35 = sbr.rel (0) target = $region13
    $region12: #{tpu_custom_call.1} parent=1 // pred_region
      %36 = dma.done [#allocation3], 1024
    $region13: #{tpu_custom_call.1} parent=1 // pred_fallthru
      _
    // Predicated region
    $region14: #{tpu_custom_call.1} parent=1 // pred_check
      _
    $region15: #{tpu_custom_call.1} parent=1 // pred_check_branch
      %38 = sbr.rel (0) target = $region17
    $region16: #{tpu_custom_call.1} parent=1 // pred_region
      %39 = dma.done [#allocation6], 1024
    $region17: #{tpu_custom_call.1} parent=1 // pred_fallthru
      _
    %v40 = vld [vmem:[#allocation2] sm:$0xff]
    %v41 = vld [vmem:[#allocation2 + $0x8] sm:$0xff]
    %v42 = vld [vmem:[#allocation2 + $0x10] sm:$0xff]
    %v43 = vld [vmem:[#allocation2 + $0x18] sm:$0xff]
    %v44 = vld [vmem:[#allocation2 + $0x20] sm:$0xff]
    %v45 = vld [vmem:[#allocation2 + $0x28] sm:$0xff]
    %v46 = vld [vmem:[#allocation2 + $0x30] sm:$0xff]
    %v47 = vld [vmem:[#allocation2 + $0x38] sm:$0xff]
    %v48 = vld [vmem:[#allocation5] sm:$0xff]
    %v49 = vld [vmem:[#allocation5 + $0x8] sm:$0xff]
    %v50 = vld [vmem:[#allocation5 + $0x10] sm:$0xff]
    %v51 = vld [vmem:[#allocation5 + $0x18] sm:$0xff]
    %v52 = vld [vmem:[#allocation5 + $0x20] sm:$0xff]
    %v53 = vld [vmem:[#allocation5 + $0x28] sm:$0xff]
    %v54 = vld [vmem:[#allocation5 + $0x30] sm:$0xff]
    %v55 = vld [vmem:[#allocation5 + $0x38] sm:$0xff]
    %v56 = vadd.f32 %v40, %v48
    %v57 = vadd.f32 %v41, %v49
    %v58 = vadd.f32 %v42, %v50
    %v59 = vadd.f32 %v43, %v51
    %v60 = vadd.f32 %v44, %v52
    %v61 = vadd.f32 %v45, %v53
    %v62 = vadd.f32 %v46, %v54
    %v63 = vadd.f32 %v47, %v55
    %64 = vst [vmem:[#allocation7] sm:$0xff] %v56
    %65 = vst [vmem:[#allocation7 + $0x8] sm:$0xff] %v57
    %66 = vst [vmem:[#allocation7 + $0x10] sm:$0xff] %v58
    %67 = vst [vmem:[#allocation7 + $0x18] sm:$0xff] %v59
    %68 = vst [vmem:[#allocation7 + $0x20] sm:$0xff] %v60
    %69 = vst [vmem:[#allocation7 + $0x28] sm:$0xff] %v61
    %70 = vst [vmem:[#allocation7 + $0x30] sm:$0xff] %v62
    %71 = vst [vmem:[#allocation7 + $0x38] sm:$0xff] %v63
    // Predicated region
    $region18: #{tpu_custom_call.1} parent=1 // pred_check
      _
    $region19: #{tpu_custom_call.1} parent=1 // pred_check_branch
      %73 = sbr.rel (0) target = $region21
    $region20: #{tpu_custom_call.1} parent=1 // pred_region
      %s75 = ssub.s32 1024, 256
      %76 = vsyncadd [#allocation4], %s75
      %s77 = sshll.u32 [#allocation7], 4
      %s78 = int_to_ptr.vmem [resolvable:$true] %s77
      %83 = dma.vmem_to_hbm [thread:$0]  %s78, 256, %s2, [#allocation4], 256, 256, 16
    $region21: #{tpu_custom_call.1} parent=1 // pred_fallthru
      _
    // Predicated region
    $region22: #{tpu_custom_call.1} parent=1 // pred_check
      _
    $region23: #{tpu_custom_call.1} parent=1 // pred_check_branch
      %85 = sbr.rel (0) target = $region25
    $region24: #{tpu_custom_call.1} parent=1 // pred_region
      %86 = dma.done [#allocation4], 1024
    $region25: #{tpu_custom_call.1} parent=1 // pred_fallthru
      _
    %87 = vsyncpa [#allocation3], 1
    %88 = vsyncpa [#allocation6], 1
    %89 = vsyncpa [#allocation4], 1

</llo_original>
